<compile_context>
chip_gen: v7x
topology: tpu7x:2x2x1
jax: 0.10.0
libtpu: 0.0.40
codegen_flags: <defaults>
</compile_context>

<pallas_src>
import jax
import jax.numpy as jnp
import numpy as np
from jax.experimental import pallas as pl
from jax.experimental.pallas import tpu as pltpu


def _round_up(n, m):
    return ((n + m - 1) // m) * m


def _make_mada_kernel(d1, d1p, ncls_hid, nct):
    """Builds the kernel body; d1 / d1p / ncls_hid / nct are static constants."""

    def kernel(x_ref, w1_ref, b1_ref, wcat_ref, bc1_ref, wc2p_ref, bc2p_ref,
               bd1f_ref, wd2p_ref, bd2p_ref, repm_ref, out_ref):
        def mm(a, w_ref):
            # MXU matmul in the weight dtype (bf16 or f32), f32 accumulation.
            return jnp.dot(a.astype(w_ref.dtype), w_ref[...],
                           preferred_element_type=jnp.float32)

        # feature = Linear(nfeatures -> 100) + ReLU (+ Dropout == identity)
        feats = jnp.maximum(mm(x_ref[...], w1_ref) + b1_ref[...], 0.0)

        # One wide matmul covers BOTH the fused domain first layer (all nct
        # heads, lanes [0:d1]) and the class first layer (lanes
        # [d1p:d1p+ncls_hid]); the class block starts at a 128-lane boundary,
        # so both slices below are lane-aligned (no cross-vreg shifts).
        cat = mm(feats, wcat_ref)                              # [TB, ncat]
        z = cat[:, :d1]                                        # [TB, nct*25]
        h = jnp.maximum(cat[:, d1p:d1p + ncls_hid] + bc1_ref[...], 0.0)

        # Class logits land in output lanes [0:nct]; lanes [nct:] stay exactly
        # zero because wc2p / bc2p are zero-padded there.
        cls_part = mm(h, wc2p_ref) + bc2p_ref[...]             # [TB, nout]
        class_logits = cls_part[:, :nct]                       # [TB, nct]

        # softmax over classes (dim=1); reciprocal goes to the idle EUP slot.
        m = jnp.max(class_logits, axis=1, keepdims=True)
        e = jnp.exp(class_logits - m)
        probs = e * pl.reciprocal(jnp.sum(e, axis=1, keepdims=True), approx=True)

        # p is a scalar per (b, c), so (p*f) @ W == p*(f @ W): apply the
        # softmax weighting AFTER the matmul, broadcast to the 25 hidden lanes
        # of each head via the precomputed exact 0/1 repeat matrix repm.
        scale = jnp.dot(probs, repm_ref[...],
                        preferred_element_type=jnp.float32)    # [TB, nct*25]
        hd = jnp.maximum(scale * z + bd1f_ref[...], 0.0)

        # Block-diagonal second layer for all nct heads, zero-padded into
        # output lanes [nct:]: class + domain logits fuse into a single
        # full-width store (one output DMA stream per grid step).
        out_ref[...] = cls_part + mm(hd, wd2p_ref) + bd2p_ref[...]

    return kernel


def _fuse_weights(params):
    """Trace-time reshapes / zero-padding of the per-head weights."""
    nct, feat_dim, nhid = params['wd1'].shape            # [nct, 100, 25]
    nplat = params['wd2'].shape[-1]
    ncls_hid = params['wc1'].shape[1]                    # 50
    d1 = nct * nhid                                      # fused domain hidden width
    d1p = _round_up(d1, 128)                             # class block lane offset
    ncat = _round_up(d1p + ncls_hid, 128)                # fused first-layer width
    nout = nct + nct * nplat                             # fused output width

    # Fused first-layer weight [100, ncat]: wd1f at lanes [0:d1], wc1 at d1p.
    wd1f = jnp.transpose(params['wd1'], (1, 0, 2)).reshape(feat_dim, d1)
    wcat = jnp.zeros((feat_dim, ncat), jnp.float32)
    wcat = wcat.at[:, :d1].set(wd1f)
    wcat = wcat.at[:, d1p:d1p + ncls_hid].set(params['wc1'])

    # Class second layer, padded into output lanes [0:nct].
    wc2p = jnp.zeros((ncls_hid, nout), jnp.float32).at[:, :nct].set(params['wc2'])
    bc2p = jnp.zeros((1, nout), jnp.float32).at[:, :nct].set(params['bc2'])

    # Domain second layer: block-diagonal over heads, padded into lanes [nct:].
    eye = jnp.eye(nct, dtype=jnp.float32)
    wd2bd = jnp.einsum('ckp,cd->ckdp', params['wd2'].astype(jnp.float32),
                       eye).reshape(d1, nct * nplat)
    wd2p = jnp.zeros((d1, nout), jnp.float32).at[:, nct:].set(wd2bd)
    bd2p = jnp.zeros((1, nout), jnp.float32).at[:, nct:].set(
        params['bd2'].reshape(1, nct * nplat))

    bd1f = params['bd1'].reshape(1, d1)
    repm = jnp.repeat(eye, nhid, axis=1)                 # [nct, nct*25], exact 0/1

    mats = dict(wcat=wcat, wc2p=wc2p, bc2p=bc2p, wd2p=wd2p, bd2p=bd2p,
                bd1f=bd1f, repm=repm)
    dims = dict(d1=d1, d1p=d1p, ncat=ncat, nout=nout,
                ncls_hid=ncls_hid, nplat=nplat)
    return mats, dims


def mada_forward(x, params, alpha, nct, matmul_dtype=jnp.bfloat16, tb_cap=2048):
    """MADA forward (eval mode).

    Returns:
      class_logits:  [B, nct]         float32
      domain_logits: [nct, B, nplat]  float32 (stacked; index [c] for head c)
    """
    del alpha  # GRL.forward is identity; alpha only matters in the backward pass.
    B, nfeat = x.shape
    mats, dims = _fuse_weights(params)
    d1, d1p, ncat = dims['d1'], dims['d1p'], dims['ncat']
    nout, ncls_hid, nplat = dims['nout'], dims['ncls_hid'], dims['nplat']

    # Row tile: aim for >= 2 grid steps on large batches (v7x megacore),
    # multiple of 16 so bf16 row packing is unmasked, capped at 2048 (VMEM is
    # not a constraint at these widths; larger tiles amortize the ~0.35 us/step
    # grid overhead and MXU pipeline fill/drain).
    align = 16 if jnp.dtype(matmul_dtype) == jnp.dtype(jnp.bfloat16) else 8
    TB = max(align, min(_round_up(pl.cdiv(B, 2), align), tb_cap))
    B_pad = _round_up(B, TB)
    if B_pad != B:
        x = jnp.pad(x, ((0, B_pad - B), (0, 0)))
    grid = (B_pad // TB,)

    cast = lambda a: a.astype(matmul_dtype)
    f32 = lambda a: a.astype(jnp.float32)
    w_inputs = (cast(params['w1']), f32(params['b1']),
                cast(mats['wcat']), f32(params['bc1']),
                cast(mats['wc2p']), f32(mats['bc2p']),
                f32(mats['bd1f']), cast(mats['wd2p']), f32(mats['bd2p']),
                f32(mats['repm']))
    x_in = cast(x)

    def resident(arr):
        # Full-array block; same block index every grid step -> stays in VMEM.
        return pl.BlockSpec(arr.shape, lambda i: (0,) * arr.ndim)

    in_specs = ([pl.BlockSpec((TB, nfeat), lambda i: (i, 0))]
                + [resident(a) for a in w_inputs])
    out_specs = pl.BlockSpec((TB, nout), lambda i: (i, 0))

    # Explicit scoped-VMEM limit: double-buffered streamed tiles + resident
    # weights + in-flight f32 activations, with 2x headroom, clamped to stay
    # well inside v7x's 64 MiB physical VMEM.
    itm = jnp.dtype(matmul_dtype).itemsize
    stream = 2 * TB * nfeat * itm + 2 * TB * nout * 4
    resident_bytes = sum(int(np.prod(a.shape)) * a.dtype.itemsize for a in w_inputs)
    act = TB * (100 + ncat + 3 * d1 + 2 * nout) * 4
    vmem_limit = int(min(max(2 * (stream + resident_bytes + act),
                             16 * 1024 * 1024), 48 * 1024 * 1024))

    kernel = _make_mada_kernel(d1, d1p, ncls_hid, nct)
    out = pl.pallas_call(
        kernel,
        grid=grid,
        in_specs=in_specs,
        out_specs=out_specs,
        out_shape=jax.ShapeDtypeStruct((B_pad, nout), jnp.float32),
        compiler_params=pltpu.CompilerParams(
            dimension_semantics=("parallel",),
            vmem_limit_bytes=vmem_limit),
    )(x_in, *w_inputs)

    class_logits = out[:B, :nct]
    dom_stacked = out[:B, nct:].reshape(B, nct, nplat).transpose(1, 0, 2)
    return class_logits, dom_stacked


def mada_reference(x, params, nct):
    """Pure-JAX reference matching the PyTorch forward (eval-mode dropout)."""
    feats = jnp.maximum(x @ params['w1'] + params['b1'], 0.0)
    h = jnp.maximum(feats @ params['wc1'] + params['bc1'], 0.0)
    cls = h @ params['wc2'] + params['bc2']
    probs = jax.nn.softmax(cls, axis=1)
    doms = []
    for c in range(nct):
        wrf = probs[:, c:c + 1] * feats
        hd = jnp.maximum(wrf @ params['wd1'][c] + params['bd1'][c], 0.0)
        doms.append(hd @ params['wd2'][c] + params['bd2'][c])
    return cls, jnp.stack(doms)


def init_params(key, nfeatures, nct, nplat):
    """Deterministic init mimicking nn.Linear (uniform +/- 1/sqrt(fan_in))."""
    def linear(k, fan_in, fan_out):
        kw, kb = jax.random.split(k)
        bound = 1.0 / (fan_in ** 0.5)
        w = jax.random.uniform(kw, (fan_in, fan_out), jnp.float32, -bound, bound)
        b = jax.random.uniform(kb, (1, fan_out), jnp.float32, -bound, bound)
        return w, b

    keys = jax.random.split(key, 3 + 2 * nct)
    w1, b1 = linear(keys[0], nfeatures, 100)
    wc1, bc1 = linear(keys[1], 100, 50)
    wc2, bc2 = linear(keys[2], 50, nct)

    wd1_list, bd1_list, wd2_list, bd2_list = [], [], [], []
    for c in range(nct):
        wd1_c, bd1_c = linear(keys[3 + 2 * c], 100, 25)
        wd2_c, bd2_c = linear(keys[4 + 2 * c], 25, nplat)
        wd1_list.append(wd1_c)
        bd1_list.append(bd1_c)
        wd2_list.append(wd2_c)
        bd2_list.append(bd2_c)

    return {
        'w1': w1, 'b1': b1,
        'wc1': wc1, 'bc1': bc1,
        'wc2': wc2, 'bc2': bc2,
        'wd1': jnp.stack(wd1_list),          # [nct, 100, 25]
        'bd1': jnp.stack(bd1_list),          # [nct, 1, 25]
        'wd2': jnp.stack(wd2_list),          # [nct, 25, nplat]
        'bd2': jnp.stack(bd2_list),          # [nct, 1, nplat]
    }


if __name__ == "__main__":
    B, nfeatures, nct, nplat = 8, 32, 4, 3
    alpha = 0.5

    key = jax.random.PRNGKey(0)
    kx, kp = jax.random.split(key)
    x = jax.random.normal(kx, (B, nfeatures), jnp.float32)
    params = init_params(kp, nfeatures, nct, nplat)

    class_logits, dom_stacked = mada_forward(x, params, alpha, nct)
    jax.block_until_ready(class_logits)
    jax.block_until_ready(dom_stacked)

    assert class_logits.shape == (B, nct)
    assert dom_stacked.shape == (nct, B, nplat)

    # Cross-check against a pure-JAX reference (loose tol covers the bf16
    # matmul operands and the approximate softmax reciprocal).
    ref_cls, ref_dom = mada_reference(x, params, nct)
    np.testing.assert_allclose(np.asarray(class_logits), np.asarray(ref_cls),
                               rtol=5e-2, atol=5e-2)
    np.testing.assert_allclose(np.asarray(dom_stacked), np.asarray(ref_dom),
                               rtol=5e-2, atol=5e-2)

    print("KERNEL_OK")
</pallas_src>

<mosaic_0001>
module attributes {stable_mosaic.version = 11 : i64} {
  func.func @kernel(%arg0: i32, %arg1: memref<16x32xbf16, #tpu.memory_space<vmem>>, %arg2: memref<32x100xbf16, #tpu.memory_space<vmem>>, %arg3: memref<1x100xf32, #tpu.memory_space<vmem>>, %arg4: memref<100x256xbf16, #tpu.memory_space<vmem>>, %arg5: memref<1x50xf32, #tpu.memory_space<vmem>>, %arg6: memref<50x16xbf16, #tpu.memory_space<vmem>>, %arg7: memref<1x16xf32, #tpu.memory_space<vmem>>, %arg8: memref<1x100xf32, #tpu.memory_space<vmem>>, %arg9: memref<100x16xbf16, #tpu.memory_space<vmem>>, %arg10: memref<1x16xf32, #tpu.memory_space<vmem>>, %arg11: memref<4x100xf32, #tpu.memory_space<vmem>>, %arg12: memref<16x16xf32, #tpu.memory_space<vmem>>) attributes {dimension_semantics = [#tpu.dimension_semantics<parallel>], iteration_bounds = array<i64: 1>, scalar_prefetch = 0 : i64, scratch_operands = 0 : i64, tpu.core_type = #tpu.core_type<tc>, window_params = [{transform_indices = @transform_0, window_bounds = array<i64: 16, 32>}, {pipeline_mode = #tpu.pipeline_mode<synchronous>, transform_indices = @transform_1, window_bounds = array<i64: 32, 100>}, {pipeline_mode = #tpu.pipeline_mode<synchronous>, transform_indices = @transform_2, window_bounds = array<i64: 1, 100>}, {pipeline_mode = #tpu.pipeline_mode<synchronous>, transform_indices = @transform_3, window_bounds = array<i64: 100, 256>}, {pipeline_mode = #tpu.pipeline_mode<synchronous>, transform_indices = @transform_4, window_bounds = array<i64: 1, 50>}, {pipeline_mode = #tpu.pipeline_mode<synchronous>, transform_indices = @transform_5, window_bounds = array<i64: 50, 16>}, {pipeline_mode = #tpu.pipeline_mode<synchronous>, transform_indices = @transform_6, window_bounds = array<i64: 1, 16>}, {pipeline_mode = #tpu.pipeline_mode<synchronous>, transform_indices = @transform_7, window_bounds = array<i64: 1, 100>}, {pipeline_mode = #tpu.pipeline_mode<synchronous>, transform_indices = @transform_8, window_bounds = array<i64: 100, 16>}, {pipeline_mode = #tpu.pipeline_mode<synchronous>, transform_indices = @transform_9, window_bounds = array<i64: 1, 16>}, {pipeline_mode = #tpu.pipeline_mode<synchronous>, transform_indices = @transform_10, window_bounds = array<i64: 4, 100>}, {transform_indices = @transform_11, window_bounds = array<i64: 16, 16>}]} {
    %c0 = arith.constant 0 : index
    %c0_0 = arith.constant 0 : index
    %0 = vector.load %arg1[%c0, %c0_0] : memref<16x32xbf16, #tpu.memory_space<vmem>>, vector<16x32xbf16>
    %c0_1 = arith.constant 0 : index
    %c0_2 = arith.constant 0 : index
    %1 = vector.load %arg2[%c0_1, %c0_2] : memref<32x100xbf16, #tpu.memory_space<vmem>>, vector<32x100xbf16>
    %cst = arith.constant dense<0.000000e+00> : vector<16x100xf32>
    %2 = tpu.matmul %0, %1, %cst {dimension_numbers = #tpu.dot_dimension_numbers<[1], [0], [0], [1], [0, 0, 1, 1], [], []>} : vector<16x32xbf16>, vector<32x100xbf16>, vector<16x100xf32> -> vector<16x100xf32>
    %c0_3 = arith.constant 0 : index
    %c0_4 = arith.constant 0 : index
    %3 = vector.load %arg3[%c0_3, %c0_4] : memref<1x100xf32, #tpu.memory_space<vmem>>, vector<1x100xf32>
    %4 = vector.broadcast %3 : vector<1x100xf32> to vector<16x100xf32>
    %5 = arith.addf %2, %4 : vector<16x100xf32>
    %cst_5 = arith.constant 0.000000e+00 : f32
    %6 = vector.broadcast %cst_5 : f32 to vector<16x100xf32>
    %7 = arith.maximumf %5, %6 : vector<16x100xf32>
    %8 = arith.truncf %7 : vector<16x100xf32> to vector<16x100xbf16>
    %c0_6 = arith.constant 0 : index
    %c0_7 = arith.constant 0 : index
    %9 = vector.load %arg4[%c0_6, %c0_7] : memref<100x256xbf16, #tpu.memory_space<vmem>>, vector<100x256xbf16>
    %cst_8 = arith.constant dense<0.000000e+00> : vector<16x256xf32>
    %10 = tpu.matmul %8, %9, %cst_8 {dimension_numbers = #tpu.dot_dimension_numbers<[1], [0], [0], [1], [0, 0, 1, 1], [], []>} : vector<16x100xbf16>, vector<100x256xbf16>, vector<16x256xf32> -> vector<16x256xf32>
    %11 = vector.extract_strided_slice %10 {offsets = [0, 0], sizes = [16, 100], strides = [1, 1]} : vector<16x256xf32> to vector<16x100xf32>
    %12 = vector.extract_strided_slice %10 {offsets = [0, 128], sizes = [16, 50], strides = [1, 1]} : vector<16x256xf32> to vector<16x50xf32>
    %c0_9 = arith.constant 0 : index
    %c0_10 = arith.constant 0 : index
    %13 = vector.load %arg5[%c0_9, %c0_10] : memref<1x50xf32, #tpu.memory_space<vmem>>, vector<1x50xf32>
    %14 = vector.broadcast %13 : vector<1x50xf32> to vector<16x50xf32>
    %15 = arith.addf %12, %14 : vector<16x50xf32>
    %cst_11 = arith.constant 0.000000e+00 : f32
    %16 = vector.broadcast %cst_11 : f32 to vector<16x50xf32>
    %17 = arith.maximumf %15, %16 : vector<16x50xf32>
    %18 = arith.truncf %17 : vector<16x50xf32> to vector<16x50xbf16>
    %c0_12 = arith.constant 0 : index
    %c0_13 = arith.constant 0 : index
    %19 = vector.load %arg6[%c0_12, %c0_13] : memref<50x16xbf16, #tpu.memory_space<vmem>>, vector<50x16xbf16>
    %cst_14 = arith.constant dense<0.000000e+00> : vector<16x16xf32>
    %20 = tpu.matmul %18, %19, %cst_14 {dimension_numbers = #tpu.dot_dimension_numbers<[1], [0], [0], [1], [0, 0, 1, 1], [], []>} : vector<16x50xbf16>, vector<50x16xbf16>, vector<16x16xf32> -> vector<16x16xf32>
    %c0_15 = arith.constant 0 : index
    %c0_16 = arith.constant 0 : index
    %21 = vector.load %arg7[%c0_15, %c0_16] : memref<1x16xf32, #tpu.memory_space<vmem>>, vector<1x16xf32>
    %22 = vector.broadcast %21 : vector<1x16xf32> to vector<16x16xf32>
    %23 = arith.addf %20, %22 : vector<16x16xf32>
    %24 = vector.extract_strided_slice %23 {offsets = [0, 0], sizes = [16, 4], strides = [1, 1]} : vector<16x16xf32> to vector<16x4xf32>
    %cst_17 = arith.constant dense<0xFF800000> : vector<16xf32>
    %25 = vector.multi_reduction <maximumf>, %24, %cst_17 [1] : vector<16x4xf32> to vector<16xf32>
    %26 = vector.shape_cast %25 : vector<16xf32> to vector<16x1xf32>
    %27 = vector.broadcast %26 : vector<16x1xf32> to vector<16x4xf32>
    %28 = arith.subf %24, %27 : vector<16x4xf32>
    %29 = math.exp %28 : vector<16x4xf32>
    %cst_18 = arith.constant dense<0.000000e+00> : vector<16xf32>
    %30 = vector.multi_reduction <add>, %29, %cst_18 [1] : vector<16x4xf32> to vector<16xf32>
    %31 = vector.shape_cast %30 : vector<16xf32> to vector<16x1xf32>
    %32 = tpu.reciprocal %31 {approx = true} : vector<16x1xf32> -> vector<16x1xf32>
    %33 = vector.broadcast %32 : vector<16x1xf32> to vector<16x4xf32>
    %34 = arith.mulf %29, %33 : vector<16x4xf32>
    %c0_19 = arith.constant 0 : index
    %c0_20 = arith.constant 0 : index
    %35 = vector.load %arg11[%c0_19, %c0_20] : memref<4x100xf32, #tpu.memory_space<vmem>>, vector<4x100xf32>
    %cst_21 = arith.constant dense<0.000000e+00> : vector<16x100xf32>
    %36 = tpu.matmul %34, %35, %cst_21 {dimension_numbers = #tpu.dot_dimension_numbers<[1], [0], [0], [1], [0, 0, 1, 1], [], []>} : vector<16x4xf32>, vector<4x100xf32>, vector<16x100xf32> -> vector<16x100xf32>
    %37 = arith.mulf %36, %11 : vector<16x100xf32>
    %c0_22 = arith.constant 0 : index
    %c0_23 = arith.constant 0 : index
    %38 = vector.load %arg8[%c0_22, %c0_23] : memref<1x100xf32, #tpu.memory_space<vmem>>, vector<1x100xf32>
    %39 = vector.broadcast %38 : vector<1x100xf32> to vector<16x100xf32>
    %40 = arith.addf %37, %39 : vector<16x100xf32>
    %cst_24 = arith.constant 0.000000e+00 : f32
    %41 = vector.broadcast %cst_24 : f32 to vector<16x100xf32>
    %42 = arith.maximumf %40, %41 : vector<16x100xf32>
    %43 = arith.truncf %42 : vector<16x100xf32> to vector<16x100xbf16>
    %c0_25 = arith.constant 0 : index
    %c0_26 = arith.constant 0 : index
    %44 = vector.load %arg9[%c0_25, %c0_26] : memref<100x16xbf16, #tpu.memory_space<vmem>>, vector<100x16xbf16>
    %cst_27 = arith.constant dense<0.000000e+00> : vector<16x16xf32>
    %45 = tpu.matmul %43, %44, %cst_27 {dimension_numbers = #tpu.dot_dimension_numbers<[1], [0], [0], [1], [0, 0, 1, 1], [], []>} : vector<16x100xbf16>, vector<100x16xbf16>, vector<16x16xf32> -> vector<16x16xf32>
    %46 = arith.addf %23, %45 : vector<16x16xf32>
    %c0_28 = arith.constant 0 : index
    %c0_29 = arith.constant 0 : index
    %47 = vector.load %arg10[%c0_28, %c0_29] : memref<1x16xf32, #tpu.memory_space<vmem>>, vector<1x16xf32>
    %48 = vector.broadcast %47 : vector<1x16xf32> to vector<16x16xf32>
    %49 = arith.addf %46, %48 : vector<16x16xf32>
    %c0_30 = arith.constant 0 : index
    %c0_31 = arith.constant 0 : index
    %50 = vector.load %arg12[%c0_30, %c0_31] : memref<16x16xf32, #tpu.memory_space<vmem>>, vector<16x16xf32>
    tpu.vector_store %arg12[%c0_30, %c0_31], %49 {strides = array<i32>} : memref<16x16xf32, #tpu.memory_space<vmem>>, vector<16x16xf32>,
    return
  }
  func.func @transform_0(%arg0: i32) -> (i32, i32) {
    %c0_i32 = arith.constant 0 : i32
    %c0_i32_0 = arith.constant 0 : i32
    return %arg0, %c0_i32 : i32, i32
  }
  func.func @transform_1(%arg0: i32) -> (i32, i32) {
    %c0_i32 = arith.constant 0 : i32
    %c0_i32_0 = arith.constant 0 : i32
    %c0_i32_1 = arith.constant 0 : i32
    return %c0_i32, %c0_i32_0 : i32, i32
  }
  func.func @transform_2(%arg0: i32) -> (i32, i32) {
    %c0_i32 = arith.constant 0 : i32
    %c0_i32_0 = arith.constant 0 : i32
    %c0_i32_1 = arith.constant 0 : i32
    return %c0_i32, %c0_i32_0 : i32, i32
  }
  func.func @transform_3(%arg0: i32) -> (i32, i32) {
    %c0_i32 = arith.constant 0 : i32
    %c0_i32_0 = arith.constant 0 : i32
    %c0_i32_1 = arith.constant 0 : i32
    return %c0_i32, %c0_i32_0 : i32, i32
  }
  func.func @transform_4(%arg0: i32) -> (i32, i32) {
    %c0_i32 = arith.constant 0 : i32
    %c0_i32_0 = arith.constant 0 : i32
    %c0_i32_1 = arith.constant 0 : i32
    return %c0_i32, %c0_i32_0 : i32, i32
  }
  func.func @transform_5(%arg0: i32) -> (i32, i32) {
    %c0_i32 = arith.constant 0 : i32
    %c0_i32_0 = arith.constant 0 : i32
    %c0_i32_1 = arith.constant 0 : i32
    return %c0_i32, %c0_i32_0 : i32, i32
  }
  func.func @transform_6(%arg0: i32) -> (i32, i32) {
    %c0_i32 = arith.constant 0 : i32
    %c0_i32_0 = arith.constant 0 : i32
    %c0_i32_1 = arith.constant 0 : i32
    return %c0_i32, %c0_i32_0 : i32, i32
  }
  func.func @transform_7(%arg0: i32) -> (i32, i32) {
    %c0_i32 = arith.constant 0 : i32
    %c0_i32_0 = arith.constant 0 : i32
    %c0_i32_1 = arith.constant 0 : i32
    return %c0_i32, %c0_i32_0 : i32, i32
  }
  func.func @transform_8(%arg0: i32) -> (i32, i32) {
    %c0_i32 = arith.constant 0 : i32
    %c0_i32_0 = arith.constant 0 : i32
    %c0_i32_1 = arith.constant 0 : i32
    return %c0_i32, %c0_i32_0 : i32, i32
  }
  func.func @transform_9(%arg0: i32) -> (i32, i32) {
    %c0_i32 = arith.constant 0 : i32
    %c0_i32_0 = arith.constant 0 : i32
    %c0_i32_1 = arith.constant 0 : i32
    return %c0_i32, %c0_i32_0 : i32, i32
  }
  func.func @transform_10(%arg0: i32) -> (i32, i32) {
    %c0_i32 = arith.constant 0 : i32
    %c0_i32_0 = arith.constant 0 : i32
    %c0_i32_1 = arith.constant 0 : i32
    return %c0_i32, %c0_i32_0 : i32, i32
  }
  func.func @transform_11(%arg0: i32) -> (i32, i32) {
    %c0_i32 = arith.constant 0 : i32
    %c0_i32_0 = arith.constant 0 : i32
    return %arg0, %c0_i32 : i32, i32
  }
}

</mosaic_0001>

<llo_original>
// kernel: tpu_custom_call.1
$region0: #{tpu_custom_call.1}
  #allocation0 [shape = 'u32[]', space=smem, size = 0x4, offset = 0x4, fixed_abs, tag = 'smem constant byte address 0x4 - core index']
  #allocation1 [shape = 'u32[144,128]{1,0:T(1,128)}', space=vmem, size = 0x12000, scoped, tag = 'internal scratch']
  %s0 = inlined_call_operand.hbm [shape: bf16[16,32], index: 0, kind: input, shape index: {}]
  %s1 = inlined_call_operand.hbm [shape: bf16[32,100], index: 1, kind: input, shape index: {}]
  %s2 = inlined_call_operand.vmem [shape: f32[1,100], index: 2, kind: input, shape index: {}]
  %s3 = inlined_call_operand.vmem [shape: bf16[100,256], index: 3, kind: input, shape index: {}]
  %s4 = inlined_call_operand.vmem [shape: f32[1,50], index: 4, kind: input, shape index: {}]
  %s5 = inlined_call_operand.vmem [shape: bf16[50,16], index: 5, kind: input, shape index: {}]
  %s6 = inlined_call_operand.hbm [shape: f32[1,16], index: 6, kind: input, shape index: {}]
  %s7 = inlined_call_operand.vmem [shape: f32[1,100], index: 7, kind: input, shape index: {}]
  %s8 = inlined_call_operand.vmem [shape: bf16[100,16], index: 8, kind: input, shape index: {}]
  %s9 = inlined_call_operand.vmem [shape: f32[1,16], index: 9, kind: input, shape index: {}]
  %s10 = inlined_call_operand.vmem [shape: f32[4,100], index: 10, kind: input, shape index: {}]
  %s11 = inlined_call_operand.hbm [shape: f32[16,16], index: 11, kind: output, shape index: {}]
  %s12 = sld [smem:[#allocation0]]
  $region66: #{tpu_custom_call.1} parent=0
    _
  %s14 = ssub.s32 1, %s12
  %s15 = scalar_select 0, %s14, %s12
  $region1: #{tpu_custom_call.1} parent=0
    #allocation2 [shape = 'u8[4096]{0}', space=vmem, size = 0x1000, scoped, tag = 'input window, operand 0, single buffered']
    #allocation3 [shape = 's32[1]{0}', space=sflag, size = 0x4, scoped, tag = 'scoped memory for tpu_custom_call.1']
    #allocation4 [shape = 's32[1]{0}', space=sflag, size = 0x4, scoped, tag = 'scoped memory for tpu_custom_call.1']
    #allocation5 [shape = 'u8[8192]{0}', space=vmem, size = 0x2000, scoped, tag = 'input window, operand 1, single buffered']
    #allocation6 [shape = 's32[1]{0}', space=sflag, size = 0x4, scoped, tag = 'scoped memory for tpu_custom_call.1']
    #allocation7 [shape = 'u8[512]{0}', space=vmem, size = 0x400, scoped, tag = 'input window, operand 6, single buffered']
    #allocation8 [shape = 'u8[8192]{0}', space=vmem, size = 0x2000, scoped, tag = 'output window, operand 0, single buffered']
    %16 = vsyncpa [#allocation3], 0
    %17 = vsyncpa [#allocation6], 0
    %18 = vsyncpa [#allocation4], 0
    // Predicated region
    $region2: #{tpu_custom_call.1} parent=1 // pred_check
      _
    $region3: #{tpu_custom_call.1} parent=1 // pred_check_branch
      %20 = sbr.rel (0) target = $region5
    $region4: #{tpu_custom_call.1} parent=1 // pred_region
      %s22 = ssub.s32 128, 128
      %23 = vsyncadd [#allocation3], %s22
      %s24 = sshll.u32 [#allocation2], 4
      %s25 = int_to_ptr.vmem [resolvable:$true] %s24
      %30 = dma.hbm_to_vmem [thread:$0]  %s0, 128, %s25, [#allocation3], 64, 64, 4
    $region5: #{tpu_custom_call.1} parent=1 // pred_fallthru
      _
    // Predicated region
    $region6: #{tpu_custom_call.1} parent=1 // pred_check
      _
    $region7: #{tpu_custom_call.1} parent=1 // pred_check_branch
      %32 = sbr.rel (0) target = $region9
    $region8: #{tpu_custom_call.1} parent=1 // pred_region
      %s34 = ssub.s32 256, 256
      %35 = vsyncadd [#allocation6], %s34
      %s36 = sshll.u32 [#allocation5], 4
      %s37 = int_to_ptr.vmem [resolvable:$true] %s36
      %42 = dma.hbm_to_vmem [thread:$0]  %s1, 256, %s37, [#allocation6], 64, 64, 4
    $region9: #{tpu_custom_call.1} parent=1 // pred_fallthru
      _
    // Predicated region
    $region10: #{tpu_custom_call.1} parent=1 // pred_check
      _
    $region11: #{tpu_custom_call.1} parent=1 // pred_check_branch
      %44 = sbr.rel (0) target = $region13
    $region12: #{tpu_custom_call.1} parent=1 // pred_region
      _
    $region13: #{tpu_custom_call.1} parent=1 // pred_fallthru
      _
    // Predicated region
    $region14: #{tpu_custom_call.1} parent=1 // pred_check
      _
    $region15: #{tpu_custom_call.1} parent=1 // pred_check_branch
      %46 = sbr.rel (0) target = $region17
    $region16: #{tpu_custom_call.1} parent=1 // pred_region
      _
    $region17: #{tpu_custom_call.1} parent=1 // pred_fallthru
      _
    // Predicated region
    $region18: #{tpu_custom_call.1} parent=1 // pred_check
      _
    $region19: #{tpu_custom_call.1} parent=1 // pred_check_branch
      %48 = sbr.rel (0) target = $region21
    $region20: #{tpu_custom_call.1} parent=1 // pred_region
      _
    $region21: #{tpu_custom_call.1} parent=1 // pred_fallthru
      _
    // Predicated region
    $region22: #{tpu_custom_call.1} parent=1 // pred_check
      _
    $region23: #{tpu_custom_call.1} parent=1 // pred_check_branch
      %50 = sbr.rel (0) target = $region25
    $region24: #{tpu_custom_call.1} parent=1 // pred_region
      _
    $region25: #{tpu_custom_call.1} parent=1 // pred_fallthru
      _
    // Predicated region
    $region26: #{tpu_custom_call.1} parent=1 // pred_check
      _
    $region27: #{tpu_custom_call.1} parent=1 // pred_check_branch
      %52 = sbr.rel (0) target = $region29
    $region28: #{tpu_custom_call.1} parent=1 // pred_region
      %s54 = ssub.s32 16, 16
      %55 = vsyncadd [#allocation6], %s54
      %s57 = sshll.u32 [#allocation7], 4
      %s58 = int_to_ptr.vmem [resolvable:$true] %s57
      %60 = dma.hbm_to_vmem [thread:$0]  %s6, 16, %s58, [#allocation6]
    $region29: #{tpu_custom_call.1} parent=1 // pred_fallthru
      _
    // Predicated region
    $region30: #{tpu_custom_call.1} parent=1 // pred_check
      _
    $region31: #{tpu_custom_call.1} parent=1 // pred_check_branch
      %62 = sbr.rel (0) target = $region33
    $region32: #{tpu_custom_call.1} parent=1 // pred_region
      _
    $region33: #{tpu_custom_call.1} parent=1 // pred_fallthru
      _
    // Predicated region
    $region34: #{tpu_custom_call.1} parent=1 // pred_check
      _
    $region35: #{tpu_custom_call.1} parent=1 // pred_check_branch
      %64 = sbr.rel (0) target = $region37
    $region36: #{tpu_custom_call.1} parent=1 // pred_region
      _
    $region37: #{tpu_custom_call.1} parent=1 // pred_fallthru
      _
    // Predicated region
    $region38: #{tpu_custom_call.1} parent=1 // pred_check
      _
    $region39: #{tpu_custom_call.1} parent=1 // pred_check_branch
      %66 = sbr.rel (0) target = $region41
    $region40: #{tpu_custom_call.1} parent=1 // pred_region
      _
    $region41: #{tpu_custom_call.1} parent=1 // pred_fallthru
      _
    // Predicated region
    $region42: #{tpu_custom_call.1} parent=1 // pred_check
      _
    $region43: #{tpu_custom_call.1} parent=1 // pred_check_branch
      %68 = sbr.rel (0) target = $region45
    $region44: #{tpu_custom_call.1} parent=1 // pred_region
      _
    $region45: #{tpu_custom_call.1} parent=1 // pred_fallthru
      _
    // Predicated region
    $region46: #{tpu_custom_call.1} parent=1 // pred_check
      _
    $region47: #{tpu_custom_call.1} parent=1 // pred_check_branch
      %70 = sbr.rel (0) target = $region49
    $region48: #{tpu_custom_call.1} parent=1 // pred_region
      %71 = dma.done [#allocation3], 128
    $region49: #{tpu_custom_call.1} parent=1 // pred_fallthru
      _
    // Predicated region
    $region50: #{tpu_custom_call.1} parent=1 // pred_check
      _
    $region51: #{tpu_custom_call.1} parent=1 // pred_check_branch
      %73 = sbr.rel (0) target = $region53
    $region52: #{tpu_custom_call.1} parent=1 // pred_region
      %74 = dma.done [#allocation6], 256
    $region53: #{tpu_custom_call.1} parent=1 // pred_fallthru
      _
    // Predicated region
    $region54: #{tpu_custom_call.1} parent=1 // pred_check
      _
    $region55: #{tpu_custom_call.1} parent=1 // pred_check_branch
      %76 = sbr.rel (0) target = $region57
    $region56: #{tpu_custom_call.1} parent=1 // pred_region
      %77 = dma.done [#allocation6], 16
    $region57: #{tpu_custom_call.1} parent=1 // pred_fallthru
      _
    %v79 = vld [vmem:[#allocation2] sm:$0xf]
    %v80 = vld [vmem:[#allocation2 + $0x4] sm:$0xf]
    %v81 = vld [vmem:[#allocation5] sm:$0xf]
    %v82 = vld [vmem:[#allocation5 + $0x4] sm:$0xf]
    %v83 = vld [vmem:[#allocation5 + $0x8] sm:$0xf]
    %v84 = vld [vmem:[#allocation5 + $0xc] sm:$0xf]
    %v85 = vld [vmem:[%s2] sm:$0x1]
    %v87 = vlaneseq
    %v88 = vshrl.u32 %v87, 7
    %v89 = vsub.s32 0, %v88
    %v90 = vrot.slane %v85, %v89
    %v94 = vunpack.c.l.b16 %v79
    %v95 = vunpack.c.l.b16 %v80
    %v96 = vpack.c.b16 %v95, %v94
    %v101 = vunpack.c.l.b16 %v81
    %v102 = vunpack.c.l.b16 %v82
    %v103 = vunpack.c.l.b16 %v83
    %v104 = vunpack.c.l.b16 %v84
    %v105 = vpack.c.b16 %v102, %v101
    %v106 = vpack.c.b16 %v104, %v103
    %vm109 = vcmask 261120
    %v111 = vsel %vm109, %v96, 0
    %113 = vmatprep.subr.bf16.mxu0 0
    %114 = vmatpush1.bf16.msra.mxu0 %v105
    %115 = vmatprep.subr.bf16.mxu0 0
    %116 = vmatpush1.bf16.msra.mxu0 %v106
    %117 = vmatprep.subr.bf16.mxu0 0
    %118 = vmatpush1.bf16.msra.mxu0 0
    %119 = vmatprep.subr.bf16.mxu0 0
    %120 = vmatpush1.bf16.msra.mxu0 0
    %121 = vmatprep.subr.bf16.mxu0 0
    %122 = vmatpush1.bf16.msra.mxu0 0
    %123 = vmatprep.subr.bf16.mxu0 0
    %124 = vmatpush1.bf16.msra.mxu0 0
    %125 = vmatprep.subr.bf16.mxu0 0
    %126 = vmatpush1.bf16.msra.mxu0 0
    %127 = vmatprep.subr.bf16.mxu0 0
    %128 = vmatpush1.bf16.msra.mxu0 0
    %129 = vmatprep.subr.bf16.mxu0 0
    %130 = vmatpush1.bf16.msra.mxu0 0
    %131 = vmatprep.subr.bf16.mxu0 0
    %132 = vmatpush1.bf16.msra.mxu0 0
    %133 = vmatprep.subr.bf16.mxu0 0
    %134 = vmatpush1.bf16.msra.mxu0 0
    %135 = vmatprep.subr.bf16.mxu0 0
    %136 = vmatpush1.bf16.msra.mxu0 0
    %137 = vmatprep.subr.bf16.mxu0 0
    %138 = vmatpush1.bf16.msra.mxu0 0
    %139 = vmatprep.subr.bf16.mxu0 0
    %140 = vmatpush1.bf16.msra.mxu0 0
    %141 = vmatprep.subr.bf16.mxu0 0
    %142 = vmatpush1.bf16.msra.mxu0 0
    %143 = vmatprep.subr.bf16.mxu0 0
    %144 = vmatpush1.bf16.msra.mxu0 0
    %145 = vmatprep.mubr.bf16.mxu0 0
    %146 = vmatmul.mubr.bf16.gmra.mrb[0].mxu0 %v111
    %v147 = vpop.f32.mrb[0].mxu0
    %v148 = vadd.f32 %v90, %v147
    %v149 = vpop.f32.mrb[0].mxu0
    %v150 = vpop.f32.mrb[0].mxu0
    %v151 = vadd.f32 %v90, %v150
    %v152 = vpop.f32.mrb[0].mxu0
    %153 = vdwg.mxu0
    %v154 = vmax.f32 %v148, 0.0
    %v155 = vmax.f32 %v151, 0.0
    %v156 = vpack.c.bf16 %v155, %v154
    %v157 = vld [vmem:[%s3] sm:$0xff]
    %v158 = vld [vmem:[%s3 + $0x8] sm:$0xff]
    %v159 = vld [vmem:[%s3 + $0x10] sm:$0xff]
    %v160 = vld [vmem:[%s3 + $0x18] sm:$0xff]
    %v161 = vld [vmem:[%s3 + $0x20] sm:$0xff]
    %v162 = vld [vmem:[%s3 + $0x28] sm:$0xff]
    %v163 = vld [vmem:[%s3 + $0x30] sm:$0xff]
    %v164 = vld [vmem:[%s3 + $0x38] sm:$0xff]
    %v165 = vld [vmem:[%s3 + $0x40] sm:$0xff]
    %v166 = vld [vmem:[%s3 + $0x48] sm:$0xff]
    %v167 = vld [vmem:[%s3 + $0x50] sm:$0xff]
    %v168 = vld [vmem:[%s3 + $0x58] sm:$0xff]
    %v169 = vld [vmem:[%s3 + $0x60] sm:$0x33]
    %v183 = vunpack.c.l.b16 %v157
    %v184 = vunpack.c.h.b16 %v157
    %v185 = vunpack.c.l.b16 %v158
    %v186 = vunpack.c.h.b16 %v158
    %v187 = vunpack.c.l.b16 %v159
    %v188 = vunpack.c.h.b16 %v159
    %v189 = vunpack.c.l.b16 %v160
    %v190 = vunpack.c.h.b16 %v160
    %v191 = vunpack.c.l.b16 %v161
    %v192 = vunpack.c.h.b16 %v161
    %v193 = vunpack.c.l.b16 %v162
    %v194 = vunpack.c.h.b16 %v162
    %v195 = vunpack.c.l.b16 %v163
    %v196 = vunpack.c.h.b16 %v163
    %v197 = vunpack.c.l.b16 %v164
    %v198 = vunpack.c.h.b16 %v164
    %v199 = vunpack.c.l.b16 %v165
    %v200 = vunpack.c.h.b16 %v165
    %v201 = vunpack.c.l.b16 %v166
    %v202 = vunpack.c.h.b16 %v166
    %v203 = vunpack.c.l.b16 %v167
    %v204 = vunpack.c.h.b16 %v167
    %v205 = vunpack.c.l.b16 %v168
    %v206 = vunpack.c.h.b16 %v168
    %v207 = vunpack.c.l.b16 %v169
    %v208 = vunpack.c.h.b16 %v169
    %v209 = vpack.c.b16 %v185, %v183
    %v210 = vpack.c.b16 %v186, %v184
    %v211 = vpack.c.b16 %v189, %v187
    %v212 = vpack.c.b16 %v190, %v188
    %v213 = vpack.c.b16 %v193, %v191
    %v214 = vpack.c.b16 %v194, %v192
    %v215 = vpack.c.b16 %v197, %v195
    %v216 = vpack.c.b16 %v198, %v196
    %v217 = vpack.c.b16 %v201, %v199
    %v218 = vpack.c.b16 %v202, %v200
    %v219 = vpack.c.b16 %v205, %v203
    %v220 = vpack.c.b16 %v206, %v204
    %v221 = vpack.c.b16 %v207, %v207
    %v222 = vpack.c.b16 %v208, %v208
    %vm235 = vcmask 818176
    %v237 = vsel %vm235, %v156, 0
    %vm239 = vcmask 1041408
    %v241 = vsel %vm239, %v221, 0
    %v244 = vsel %vm239, %v222, 0
    %246 = vmatprep.subr.bf16.mxu0 %v210
    %247 = vmatpush1.bf16.msra.mxu0 %v209
    %248 = vmatprep.subr.bf16.mxu0 %v212
    %249 = vmatpush1.bf16.msra.mxu0 %v211
    %250 = vmatprep.subr.bf16.mxu0 %v214
    %251 = vmatpush1.bf16.msra.mxu0 %v213
    %252 = vmatprep.subr.bf16.mxu0 %v216
    %253 = vmatpush1.bf16.msra.mxu0 %v215
    %254 = vmatprep.subr.bf16.mxu0 %v218
    %255 = vmatpush1.bf16.msra.mxu0 %v217
    %256 = vmatprep.subr.bf16.mxu0 %v220
    %257 = vmatpush1.bf16.msra.mxu0 %v219
    %258 = vmatprep.subr.bf16.mxu0 %v244
    %259 = vmatpush1.bf16.msra.mxu0 %v241
    %260 = vmatprep.subr.bf16.mxu0 0
    %261 = vmatpush1.bf16.msra.mxu0 0
    %262 = vmatprep.subr.bf16.mxu0 0
    %263 = vmatpush1.bf16.msra.mxu0 0
    %264 = vmatprep.subr.bf16.mxu0 0
    %265 = vmatpush1.bf16.msra.mxu0 0
    %266 = vmatprep.subr.bf16.mxu0 0
    %267 = vmatpush1.bf16.msra.mxu0 0
    %268 = vmatprep.subr.bf16.mxu0 0
    %269 = vmatpush1.bf16.msra.mxu0 0
    %270 = vmatprep.subr.bf16.mxu0 0
    %271 = vmatpush1.bf16.msra.mxu0 0
    %272 = vmatprep.subr.bf16.mxu0 0
    %273 = vmatpush1.bf16.msra.mxu0 0
    %274 = vmatprep.subr.bf16.mxu0 0
    %275 = vmatpush1.bf16.msra.mxu0 0
    %276 = vmatprep.subr.bf16.mxu0 0
    %277 = vmatpush1.bf16.msra.mxu0 0
    %278 = vmatprep.mubr.bf16.mxu0 0
    %279 = vmatmul.mubr.bf16.gmra.mrb[0].mxu0 %v237
    %v280 = vpop.f32.mrb[0].mxu0
    %v281 = vadd.f32 0.0, %v280
    %v282 = vpop.f32.mrb[0].mxu0
    %v283 = vadd.f32 0.0, %v282
    %v284 = vpop.f32.mrb[0].mxu0
    %v285 = vadd.f32 0.0, %v284
    %v286 = vpop.f32.mrb[0].mxu0
    %v287 = vadd.f32 0.0, %v286
    %288 = vdwg.mxu0
    %v289 = vld [vmem:[%s4] sm:$0x1]
    %v291 = vlaneseq
    %v292 = vshrl.u32 %v291, 7
    %v293 = vsub.s32 0, %v292
    %v294 = vrot.slane %v289, %v293
    %v296 = vadd.f32 %v283, %v294
    %v297 = vadd.f32 %v287, %v294
    %v298 = vmax.f32 %v296, 0.0
    %v299 = vmax.f32 %v297, 0.0
    %v300 = vpack.c.bf16 %v299, %v298
    %v301 = vld [vmem:[%s5] sm:$0xf]
    %v302 = vld [vmem:[%s5 + $0x4] sm:$0xf]
    %v303 = vld [vmem:[%s5 + $0x8] sm:$0xf]
    %v304 = vld [vmem:[%s5 + $0xc] sm:$0xf]
    %v305 = vld [vmem:[%s5 + $0x10] sm:$0xf]
    %v306 = vld [vmem:[%s5 + $0x14] sm:$0xf]
    %v307 = vld [vmem:[%s5 + $0x18] sm:$0x1]
    %v308 = vld [vmem:[#allocation7] sm:$0x1]
    %v310 = vlaneseq
    %v311 = vshrl.u32 %v310, 7
    %v312 = vsub.s32 0, %v311
    %v313 = vrot.slane %v308, %v312
    %v322 = vunpack.c.l.b16 %v301
    %v323 = vunpack.c.l.b16 %v302
    %v324 = vunpack.c.l.b16 %v303
    %v325 = vunpack.c.l.b16 %v304
    %v326 = vunpack.c.l.b16 %v305
    %v327 = vunpack.c.l.b16 %v306
    %v328 = vunpack.c.l.b16 %v307
    %v329 = vpack.c.b16 %v323, %v322
    %v330 = vpack.c.b16 %v325, %v324
    %v331 = vpack.c.b16 %v327, %v326
    %v332 = vpack.c.b16 %v328, %v328
    %vm336 = vcmask 408576
    %v338 = vsel %vm336, %v300, 0
    %vm340 = vcmask 1040384
    %v342 = vsel %vm340, %v332, 0
    %344 = vmatprep.subr.bf16.mxu0 0
    %345 = vmatpush1.bf16.msra.mxu0 %v329
    %346 = vmatprep.subr.bf16.mxu0 0
    %347 = vmatpush1.bf16.msra.mxu0 %v330
    %348 = vmatprep.subr.bf16.mxu0 0
    %349 = vmatpush1.bf16.msra.mxu0 %v331
    %350 = vmatprep.subr.bf16.mxu0 0
    %351 = vmatpush1.bf16.msra.mxu0 %v342
    %352 = vmatprep.subr.bf16.mxu0 0
    %353 = vmatpush1.bf16.msra.mxu0 0
    %354 = vmatprep.subr.bf16.mxu0 0
    %355 = vmatpush1.bf16.msra.mxu0 0
    %356 = vmatprep.subr.bf16.mxu0 0
    %357 = vmatpush1.bf16.msra.mxu0 0
    %358 = vmatprep.subr.bf16.mxu0 0
    %359 = vmatpush1.bf16.msra.mxu0 0
    %360 = vmatprep.subr.bf16.mxu0 0
    %361 = vmatpush1.bf16.msra.mxu0 0
    %362 = vmatprep.subr.bf16.mxu0 0
    %363 = vmatpush1.bf16.msra.mxu0 0
    %364 = vmatprep.subr.bf16.mxu0 0
    %365 = vmatpush1.bf16.msra.mxu0 0
    %366 = vmatprep.subr.bf16.mxu0 0
    %367 = vmatpush1.bf16.msra.mxu0 0
    %368 = vmatprep.subr.bf16.mxu0 0
    %369 = vmatpush1.bf16.msra.mxu0 0
    %370 = vmatprep.subr.bf16.mxu0 0
    %371 = vmatpush1.bf16.msra.mxu0 0
    %372 = vmatprep.subr.bf16.mxu0 0
    %373 = vmatpush1.bf16.msra.mxu0 0
    %374 = vmatprep.subr.bf16.mxu0 0
    %375 = vmatpush1.bf16.msra.mxu0 0
    %376 = vmatprep.mubr.bf16.mxu0 0
    %377 = vmatmul.mubr.bf16.gmra.mrb[0].mxu0 %v338
    %v378 = vpop.f32.mrb[0].mxu0
    %v379 = vadd.f32 %v313, %v378
    %v380 = vpop.f32.mrb[0].mxu0
    %v381 = vpop.f32.mrb[0].mxu0
    %v382 = vadd.f32 %v313, %v381
    %v383 = vpop.f32.mrb[0].mxu0
    %384 = vdwg.mxu0
    %vm385 = vcmask 31744
    %v386 = vsel %vm385, %v379, -inf
    %387 = vmax.xlane.f32.xlu0 %v386
    %v388 = vpop.xlane.xlu0 %387
    %v389 = vsel %vm385, %v382, -inf
    %390 = vmax.xlane.f32.xlu0 %v389
    %v391 = vpop.xlane.xlu0 %390
    %v392 = vsub.f32 %v379, %v388
    %v393 = vsub.f32 %v382, %v391
    %v394 = vmul.f32 %v392, 1.442695
    %v395 = vpow.pop %v394
    %v396 = vmul.f32 %v393, 1.442695
    %v397 = vpow.pop %v396
    %v398 = vsel %vm385, %v395, 0.0
    %399 = vadd.xlane.f32.xlu0 %v398
    %v400 = vpop.xlane.xlu0 %399
    %v401 = vsel %vm385, %v397, 0.0
    %402 = vadd.xlane.f32.xlu0 %v401
    %v403 = vpop.xlane.xlu0 %402
    %v404 = vrcp.pop %v400
    %v405 = vrcp.pop %v403
    %v406 = vmul.f32 %v395, %v404
    %v407 = vmul.f32 %v397, %v405
    %v408 = vld [vmem:[%s10] sm:$0xf]
    %v410 = vsel %vm385, %v406, 0
    %v413 = vsel %vm385, %v407, 0
    %vm415 = vcmask 1043456
    %v417 = vsel %vm415, %v408, 0
    %419 = vmatprep.subr.mxu0 0.0
    %420 = vmatpush1.msra.mxu0 %v417
    %421 = vmatprep.subr.mxu0 0.0
    %422 = vmatpush1.msra.mxu0 0.0
    %423 = vmatprep.subr.mxu0 0.0
    %424 = vmatpush1.msra.mxu0 0.0
    %425 = vmatprep.subr.mxu0 0.0
    %426 = vmatpush1.msra.mxu0 0.0
    %427 = vmatprep.subr.mxu0 0.0
    %428 = vmatpush1.msra.mxu0 0.0
    %429 = vmatprep.subr.mxu0 0.0
    %430 = vmatpush1.msra.mxu0 0.0
    %431 = vmatprep.subr.mxu0 0.0
    %432 = vmatpush1.msra.mxu0 0.0
    %433 = vmatprep.subr.mxu0 0.0
    %434 = vmatpush1.msra.mxu0 0.0
    %435 = vmatprep.subr.mxu0 0.0
    %436 = vmatpush1.msra.mxu0 0.0
    %437 = vmatprep.subr.mxu0 0.0
    %438 = vmatpush1.msra.mxu0 0.0
    %439 = vmatprep.subr.mxu0 0.0
    %440 = vmatpush1.msra.mxu0 0.0
    %441 = vmatprep.subr.mxu0 0.0
    %442 = vmatpush1.msra.mxu0 0.0
    %443 = vmatprep.subr.mxu0 0.0
    %444 = vmatpush1.msra.mxu0 0.0
    %445 = vmatprep.subr.mxu0 0.0
    %446 = vmatpush1.msra.mxu0 0.0
    %447 = vmatprep.subr.mxu0 0.0
    %448 = vmatpush1.msra.mxu0 0.0
    %449 = vmatprep.subr.mxu0 0.0
    %450 = vmatpush1.msra.mxu0 0.0
    %451 = vmatprep.subr.mxu0 0.0
    %452 = vmatpush1.msra.mxu0 0.0
    %453 = vmatprep.subr.mxu0 0.0
    %454 = vmatpush1.msra.mxu0 0.0
    %455 = vmatprep.subr.mxu0 0.0
    %456 = vmatpush1.msra.mxu0 0.0
    %457 = vmatprep.subr.mxu0 0.0
    %458 = vmatpush1.msra.mxu0 0.0
    %459 = vmatprep.subr.mxu0 0.0
    %460 = vmatpush1.msra.mxu0 0.0
    %461 = vmatprep.subr.mxu0 0.0
    %462 = vmatpush1.msra.mxu0 0.0
    %463 = vmatprep.subr.mxu0 0.0
    %464 = vmatpush1.msra.mxu0 0.0
    %465 = vmatprep.subr.mxu0 0.0
    %466 = vmatpush1.msra.mxu0 0.0
    %467 = vmatprep.subr.mxu0 0.0
    %468 = vmatpush1.msra.mxu0 0.0
    %469 = vmatprep.subr.mxu0 0.0
    %470 = vmatpush1.msra.mxu0 0.0
    %471 = vmatprep.subr.mxu0 0.0
    %472 = vmatpush1.msra.mxu0 0.0
    %473 = vmatprep.subr.mxu0 0.0
    %474 = vmatpush1.msra.mxu0 0.0
    %475 = vmatprep.subr.mxu0 0.0
    %476 = vmatpush1.msra.mxu0 0.0
    %477 = vmatprep.subr.mxu0 0.0
    %478 = vmatpush1.msra.mxu0 0.0
    %479 = vmatprep.subr.mxu0 0.0
    %480 = vmatpush1.msra.mxu0 0.0
    %481 = vmatprep.subr.mxu0 0.0
    %482 = vmatpush1.msra.mxu0 0.0
    %483 = vmatprep.mubr.f32.mxu0 0.0
    %484 = vmatmul.mubr.f32.gmra.mrb[0].mxu0 %v410
    %v485 = vpop.f32.mrb[0].mxu0
    %v486 = vadd.f32 0.0, %v485
    %v487 = vpop.f32.mrb[0].mxu0
    %488 = vmatprep.mubr.f32.mxu0 0.0
    %489 = vmatmul.mubr.f32.gmra.mrb[0].mxu0 %v413
    %v490 = vpop.f32.mrb[0].mxu0
    %v491 = vadd.f32 0.0, %v490
    %v492 = vpop.f32.mrb[0].mxu0
    %493 = vdwg.mxu0
    %v494 = vmul.f32 %v486, %v281
    %v495 = vmul.f32 %v491, %v285
    %v496 = vld [vmem:[%s7] sm:$0x1]
    %v498 = vlaneseq
    %v499 = vshrl.u32 %v498, 7
    %v500 = vsub.s32 0, %v499
    %v501 = vrot.slane %v496, %v500
    %v503 = vadd.f32 %v494, %v501
    %v504 = vadd.f32 %v495, %v501
    %v505 = vmax.f32 %v503, 0.0
    %v506 = vmax.f32 %v504, 0.0
    %v507 = vpack.c.bf16 %v506, %v505
    %v508 = vld [vmem:[%s8] sm:$0xf]
    %v509 = vld [vmem:[%s8 + $0x4] sm:$0xf]
    %v510 = vld [vmem:[%s8 + $0x8] sm:$0xf]
    %v511 = vld [vmem:[%s8 + $0xc] sm:$0xf]
    %v512 = vld [vmem:[%s8 + $0x10] sm:$0xf]
    %v513 = vld [vmem:[%s8 + $0x14] sm:$0xf]
    %v514 = vld [vmem:[%s8 + $0x18] sm:$0xf]
    %v515 = vld [vmem:[%s8 + $0x1c] sm:$0xf]
    %v516 = vld [vmem:[%s8 + $0x20] sm:$0xf]
    %v517 = vld [vmem:[%s8 + $0x24] sm:$0xf]
    %v518 = vld [vmem:[%s8 + $0x28] sm:$0xf]
    %v519 = vld [vmem:[%s8 + $0x2c] sm:$0xf]
    %v520 = vld [vmem:[%s8 + $0x30] sm:$0x3]
    %v534 = vunpack.c.l.b16 %v508
    %v535 = vunpack.c.l.b16 %v509
    %v536 = vunpack.c.l.b16 %v510
    %v537 = vunpack.c.l.b16 %v511
    %v538 = vunpack.c.l.b16 %v512
    %v539 = vunpack.c.l.b16 %v513
    %v540 = vunpack.c.l.b16 %v514
    %v541 = vunpack.c.l.b16 %v515
    %v542 = vunpack.c.l.b16 %v516
    %v543 = vunpack.c.l.b16 %v517
    %v544 = vunpack.c.l.b16 %v518
    %v545 = vunpack.c.l.b16 %v519
    %v546 = vunpack.c.l.b16 %v520
    %v547 = vpack.c.b16 %v535, %v534
    %v548 = vpack.c.b16 %v537, %v536
    %v549 = vpack.c.b16 %v539, %v538
    %v550 = vpack.c.b16 %v541, %v540
    %v551 = vpack.c.b16 %v543, %v542
    %v552 = vpack.c.b16 %v545, %v544
    %v553 = vpack.c.b16 %v546, %v546
    %v561 = vsel %vm235, %v507, 0
    %v564 = vsel %vm239, %v553, 0
    %566 = vmatprep.subr.bf16.mxu0 0
    %567 = vmatpush1.bf16.msra.mxu0 %v547
    %568 = vmatprep.subr.bf16.mxu0 0
    %569 = vmatpush1.bf16.msra.mxu0 %v548
    %570 = vmatprep.subr.bf16.mxu0 0
    %571 = vmatpush1.bf16.msra.mxu0 %v549
    %572 = vmatprep.subr.bf16.mxu0 0
    %573 = vmatpush1.bf16.msra.mxu0 %v550
    %574 = vmatprep.subr.bf16.mxu0 0
    %575 = vmatpush1.bf16.msra.mxu0 %v551
    %576 = vmatprep.subr.bf16.mxu0 0
    %577 = vmatpush1.bf16.msra.mxu0 %v552
    %578 = vmatprep.subr.bf16.mxu0 0
    %579 = vmatpush1.bf16.msra.mxu0 %v564
    %580 = vmatprep.subr.bf16.mxu0 0
    %581 = vmatpush1.bf16.msra.mxu0 0
    %582 = vmatprep.subr.bf16.mxu0 0
    %583 = vmatpush1.bf16.msra.mxu0 0
    %584 = vmatprep.subr.bf16.mxu0 0
    %585 = vmatpush1.bf16.msra.mxu0 0
    %586 = vmatprep.subr.bf16.mxu0 0
    %587 = vmatpush1.bf16.msra.mxu0 0
    %588 = vmatprep.subr.bf16.mxu0 0
    %589 = vmatpush1.bf16.msra.mxu0 0
    %590 = vmatprep.subr.bf16.mxu0 0
    %591 = vmatpush1.bf16.msra.mxu0 0
    %592 = vmatprep.subr.bf16.mxu0 0
    %593 = vmatpush1.bf16.msra.mxu0 0
    %594 = vmatprep.subr.bf16.mxu0 0
    %595 = vmatpush1.bf16.msra.mxu0 0
    %596 = vmatprep.subr.bf16.mxu0 0
    %597 = vmatpush1.bf16.msra.mxu0 0
    %598 = vmatprep.mubr.bf16.mxu0 0
    %599 = vmatmul.mubr.bf16.gmra.mrb[0].mxu0 %v561
    %v600 = vpop.f32.mrb[0].mxu0
    %v601 = vadd.f32 0.0, %v600
    %v602 = vpop.f32.mrb[0].mxu0
    %v603 = vpop.f32.mrb[0].mxu0
    %v604 = vadd.f32 0.0, %v603
    %v605 = vpop.f32.mrb[0].mxu0
    %606 = vdwg.mxu0
    %v607 = vadd.f32 %v379, %v601
    %v608 = vadd.f32 %v382, %v604
    %v609 = vld [vmem:[%s9] sm:$0x1]
    %v611 = vlaneseq
    %v612 = vshrl.u32 %v611, 7
    %v613 = vsub.s32 0, %v612
    %v614 = vrot.slane %v609, %v613
    %v616 = vadd.f32 %v607, %v614
    %v617 = vadd.f32 %v608, %v614
    %vm618 = vcmask 130048
    %619 = vst.msk [vmem:[#allocation8] sm:$0xff] %vm618, %v616
    %620 = vst.msk [vmem:[#allocation8 + $0x8] sm:$0xff] %vm618, %v617
    // Predicated region
    $region58: #{tpu_custom_call.1} parent=1 // pred_check
      _
    $region59: #{tpu_custom_call.1} parent=1 // pred_check_branch
      %622 = sbr.rel (0) target = $region61
    $region60: #{tpu_custom_call.1} parent=1 // pred_region
      %s624 = ssub.s32 256, 256
      %625 = vsyncadd [#allocation4], %s624
      %s626 = sshll.u32 [#allocation8], 4
      %s627 = int_to_ptr.vmem [resolvable:$true] %s626
      %632 = dma.vmem_to_hbm [thread:$0]  %s627, 256, %s11, [#allocation4], 128, 128, 8
    $region61: #{tpu_custom_call.1} parent=1 // pred_fallthru
      _
    // Predicated region
    $region62: #{tpu_custom_call.1} parent=1 // pred_check
      _
    $region63: #{tpu_custom_call.1} parent=1 // pred_check_branch
      %634 = sbr.rel (0) target = $region65
    $region64: #{tpu_custom_call.1} parent=1 // pred_region
      %635 = dma.done [#allocation4], 256
    $region65: #{tpu_custom_call.1} parent=1 // pred_fallthru
      _
    %636 = vsyncpa [#allocation3], 1
    %637 = vsyncpa [#allocation6], 1
    %638 = vsyncpa [#allocation4], 1

</llo_original>
